<compile_context>
chip_gen: v7x
topology: tpu7x:2x2x1
jax: 0.10.0
libtpu: 0.0.40
codegen_flags: <defaults>
</compile_context>

<pallas_src>
import functools

import jax
import jax.numpy as jnp
from jax.experimental import pallas as pl
from jax.experimental.pallas import tpu as pltpu


# --------------------------------------------------------------------------
# helpers
# --------------------------------------------------------------------------

def _layernorm(x, g, b, eps=1e-5):
    mu = jnp.mean(x, axis=-1, keepdims=True)
    var = jnp.mean((x - mu) ** 2, axis=-1, keepdims=True)
    return (x - mu) * jax.lax.rsqrt(var + eps) * g + b


def _vmem_limit(working_set_bytes):
    """Generation-aware VMEM budget: size from the working set, clamp to chip."""
    try:
        cap = int(pltpu.get_tpu_info().vmem_capacity_bytes)
    except Exception:
        cap = 64 * 1024 * 1024          # conservative floor: v7x per-core VMEM
    budget = int(cap * 0.85)            # leave headroom for compiler scratch
    need = int(working_set_bytes * 1.5) + (8 << 20)
    return min(max(need, 32 << 20), budget)


def _cost_estimate(flops, transcendentals, bytes_accessed):
    try:
        return pl.CostEstimate(flops=int(flops),
                               transcendentals=int(transcendentals),
                               bytes_accessed=int(bytes_accessed))
    except Exception:
        return None


# ------------- fused patch-embed + CLS + pos-emb + pre-LN kernel -------------

def _embed_kernel(p_ref, w_ref, pos_ref, g_ref, b_ref, o_ref):
    # p_ref: [1, S, Kpad] bf16 (row 0 is the all-zero CLS slot)
    # w_ref: [Kpad, D] bf16 ; pos_ref: [S, D] f32 (class_emb folded into row 0)
    pe = jnp.dot(p_ref[0], w_ref[...], preferred_element_type=jnp.float32)  # [S, D]
    o_ref[0] = _layernorm(pe + pos_ref[...], g_ref[...], b_ref[...])


def _embed_call(patches, patch_w, cls_pos, ln_g, ln_b, fast):
    B, S, Kpad = patches.shape
    D = patch_w.shape[1]

    def const_spec(shape):
        imap = lambda b: (0,) * len(shape)
        if fast:
            # Constant-index weights: single buffer; don't double-buffer data
            # that never changes across grid steps (review item 2).
            return pl.BlockSpec(shape, imap, pipeline_mode=pl.Buffered(1))
        return pl.BlockSpec(shape, imap)

    working = 2 * S * Kpad * 2 + Kpad * D * 2 + 4 * S * D * 4
    return pl.pallas_call(
        _embed_kernel,
        out_shape=jax.ShapeDtypeStruct((B, S, D), jnp.float32),
        grid=(B,),
        in_specs=[pl.BlockSpec((1, S, Kpad), lambda b: (b, 0, 0)),
                  const_spec((Kpad, D)),
                  const_spec((S, D)),
                  const_spec((1, D)),
                  const_spec((1, D))],
        out_specs=pl.BlockSpec((1, S, D), lambda b: (b, 0, 0)),
        compiler_params=pltpu.CompilerParams(
            dimension_semantics=("parallel",),
            vmem_limit_bytes=_vmem_limit(working)),
        cost_estimate=_cost_estimate(
            2 * B * S * Kpad * D, 0,
            patches.nbytes + patch_w.nbytes + cls_pos.nbytes + B * S * D * 4),
    )(patches, patch_w, cls_pos, ln_g, ln_b)


_EMBED_FAST = None


def embed_op(patches, patch_w, cls_pos, ln_g, ln_b):
    global _EMBED_FAST
    if _EMBED_FAST is None:
        try:
            out = jax.block_until_ready(
                _embed_call(patches, patch_w, cls_pos, ln_g, ln_b, fast=True))
            _EMBED_FAST = True
            return out
        except Exception:
            _EMBED_FAST = False     # pl.Buffered(1) not available -> default
    return _embed_call(patches, patch_w, cls_pos, ln_g, ln_b, fast=_EMBED_FAST)


# --------------------- fused CLIP transformer encoder stack -----------------

def _encoder_stack_kernel(num_heads, fast_heads,
                          x_ref, ln1_g, ln1_b, wqkv, bqkv, wo, bo,
                          ln2_g, ln2_b, w1, b1, w2, b2, o_ref):
    l = pl.program_id(1)

    # Layer 0 of each image: seed the VMEM-resident residual stream.
    @pl.when(l == 0)
    def _():
        o_ref[0] = x_ref[0]

    x = o_ref[0]                              # [S, D] f32, resident across l
    S, D = x.shape
    H = num_heads
    hd = D // H

    # --- self attention (pre-LN); fused [D,3D] QKV matmul, bf16 in / f32 acc ---
    h = _layernorm(x, ln1_g[0], ln1_b[0])
    qkv = jnp.dot(h.astype(jnp.bfloat16), wqkv[0],
                  preferred_element_type=jnp.float32) + bqkv[0]        # [S, 3D]
    # (attention scale hd**-0.5 is folded into the Q columns of wqkv at init)

    if fast_heads:
        # One layout move each way (review item 1): no per-head lane slices.
        qkv_h = jnp.transpose(qkv.reshape(S, 3 * H, hd), (1, 0, 2))    # [3H, S, hd]
        q, k, v = qkv_h[:H], qkv_h[H:2 * H], qkv_h[2 * H:]
    else:
        # Known-good fallback: lane slices + leading-dim stack.
        def split_heads(base):
            return jnp.concatenate(
                [qkv[:, base + i * hd: base + (i + 1) * hd][None]
                 for i in range(H)], axis=0)
        q, k, v = split_heads(0), split_heads(D), split_heads(2 * D)

    s = jnp.einsum('hqd,hkd->hqk', q.astype(jnp.bfloat16), k.astype(jnp.bfloat16),
                   preferred_element_type=jnp.float32)                 # [H, S, S]
    s = s - jnp.max(s, axis=-1, keepdims=True)
    p = jnp.exp(s)
    p = p * pl.reciprocal(jnp.sum(p, axis=-1, keepdims=True), approx=True)
    ctx = jnp.einsum('hqk,hkd->hqd', p.astype(jnp.bfloat16), v.astype(jnp.bfloat16),
                     preferred_element_type=jnp.float32)               # [H, S, hd]

    if fast_heads:
        attn_in = jnp.transpose(ctx, (1, 0, 2)).reshape(S, D)
    else:
        attn_in = jnp.concatenate([ctx[i] for i in range(H)], axis=-1)

    attn = jnp.dot(attn_in.astype(jnp.bfloat16), wo[0],
                   preferred_element_type=jnp.float32) + bo[0]
    x = x + attn

    # --- MLP (pre-LN, quick_gelu as in CLIP) ---
    h = _layernorm(x, ln2_g[0], ln2_b[0])
    h = jnp.dot(h.astype(jnp.bfloat16), w1[0],
                preferred_element_type=jnp.float32) + b1[0]
    h = h * jax.nn.sigmoid(1.702 * h)
    h = jnp.dot(h.astype(jnp.bfloat16), w2[0],
                preferred_element_type=jnp.float32) + b2[0]
    o_ref[0] = x + h


_LAYER_WEIGHT_ORDER = ('ln1_g', 'ln1_b', 'wqkv', 'bqkv', 'wo', 'bo',
                       'ln2_g', 'ln2_b', 'w1', 'b1', 'w2', 'b2')


def _encoder_stack_call(x, layer_w, num_heads, fast_heads):
    B, S, D = x.shape
    weights = tuple(layer_w[n] for n in _LAYER_WEIGHT_ORDER)
    L = layer_w['wqkv'].shape[0]
    mlp = layer_w['w1'].shape[2]

    def stacked_spec(w):
        # Weights are indexed by the inner "arbitrary" layer axis -> Pallas
        # double-buffers them, overlapping layer l+1 weight DMA with layer l.
        return pl.BlockSpec((1,) + tuple(w.shape[1:]), lambda b, l: (l, 0, 0))

    per_layer_wbytes = sum(int(w.nbytes) for w in weights) // L
    flops = B * L * (2 * S * D * (4 * D + 2 * mlp) + 4 * S * S * D)
    trans = B * L * (num_heads * S * S + S * mlp)
    bytes_acc = B * L * per_layer_wbytes + 2 * B * S * D * 4
    # Per-grid-step VMEM working set: double-buffered layer weights + resident
    # x/out tiles + the big f32 intermediates (qkv, scores, mlp activation).
    working = (2 * per_layer_wbytes + 3 * S * D * 4
               + 4 * (3 * S * D + 2 * num_heads * S * S + 2 * S * mlp + 4 * S * D))

    return pl.pallas_call(
        functools.partial(_encoder_stack_kernel, num_heads, fast_heads),
        out_shape=jax.ShapeDtypeStruct((B, S, D), jnp.float32),
        grid=(B, L),
        in_specs=[pl.BlockSpec((1, S, D), lambda b, l: (b, 0, 0))]
                 + [stacked_spec(w) for w in weights],
        out_specs=pl.BlockSpec((1, S, D), lambda b, l: (b, 0, 0)),
        compiler_params=pltpu.CompilerParams(
            dimension_semantics=("parallel", "arbitrary"),
            vmem_limit_bytes=_vmem_limit(working)),
        cost_estimate=_cost_estimate(flops, trans, bytes_acc),
    )(x, *weights)


_LAYER_FAST = None


def encoder_stack(x, layer_w, num_heads):
    """All encoder layers in one pallas_call; probe the fast head-relayout path."""
    global _LAYER_FAST
    if _LAYER_FAST is None:
        try:
            out = jax.block_until_ready(
                _encoder_stack_call(x, layer_w, num_heads, fast_heads=True))
            _LAYER_FAST = True
            return out
        except Exception:
            _LAYER_FAST = False     # reshape/transpose relayout not lowerable here
    return _encoder_stack_call(x, layer_w, num_heads, fast_heads=_LAYER_FAST)


# ------------------------------ parameters ----------------------------------

def init_params(key, cfg):
    D = cfg['hidden']
    C = cfg['channels']
    psz = cfg['patch_size']
    S = (cfg['image_size'] // psz) ** 2 + 1
    mlp = cfg['mlp']
    L = cfg['layers']
    H = cfg['heads']
    hd = D // H
    K = C * psz * psz
    Kpad = ((K + 127) // 128) * 128

    def normal(k, shape, std=0.02):
        return std * jax.random.normal(k, shape, jnp.float32)

    (k_patch, k_cls, k_pos, k_q, k_k, k_v, k_o, k_1, k_2) = jax.random.split(key, 9)

    # conv weight [D, C, p, p] flattened to [C*p*p, D] (im2col form), K padded
    # to a lane-aligned multiple of 128.
    patch_w = jnp.pad(normal(k_patch, (K, D)),
                      ((0, Kpad - K), (0, 0))).astype(jnp.bfloat16)

    # Fold the attention scale into the Q projection (review item: removes a
    # full [H,S,hd] VPU multiply per grid step at zero cost).
    scale = float(hd) ** -0.5
    wq = normal(k_q, (L, D, D)) * scale
    wk = normal(k_k, (L, D, D))
    wv = normal(k_v, (L, D, D))

    params = {
        'patch_w': patch_w,
        'class_emb': normal(k_cls, (D,)),
        'pos_emb': normal(k_pos, (S, D)),
        'pre_ln_g': jnp.ones((1, D), jnp.float32),
        'pre_ln_b': jnp.zeros((1, D), jnp.float32),
        # Layer weights stacked along a leading L axis so the encoder stack can
        # be a single pallas_call with grid=(B, L).
        'layers': {
            'ln1_g': jnp.ones((L, 1, D), jnp.float32),
            'ln1_b': jnp.zeros((L, 1, D), jnp.float32),
            'wqkv': jnp.concatenate([wq, wk, wv], axis=2).astype(jnp.bfloat16),
            'bqkv': jnp.zeros((L, 1, 3 * D), jnp.float32),
            'wo': normal(k_o, (L, D, D)).astype(jnp.bfloat16),
            'bo': jnp.zeros((L, 1, D), jnp.float32),
            'ln2_g': jnp.ones((L, 1, D), jnp.float32),
            'ln2_b': jnp.zeros((L, 1, D), jnp.float32),
            'w1': normal(k_1, (L, D, mlp)).astype(jnp.bfloat16),
            'b1': jnp.zeros((L, 1, mlp), jnp.float32),
            'w2': normal(k_2, (L, mlp, D)).astype(jnp.bfloat16),
            'b2': jnp.zeros((L, 1, D), jnp.float32),
        },
    }
    return params


# ------------------------------ forward pass ---------------------------------

def vision_encoder_forward(params, images, cfg, extract_type='patch'):
    B, C, Himg, Wimg = images.shape
    psz = cfg['patch_size']
    gh, gw = Himg // psz, Wimg // psz
    NP = gh * gw
    K = C * psz * psz
    Kpad = params['patch_w'].shape[0]

    # im2col: [B, NP, C*p*p] with (C, ph, pw) ordering (matches Conv2d weights);
    # prepend a zero row (CLS slot) and zero-pad K to the lane-aligned Kpad.
    patches = images.reshape(B, C, gh, psz, gw, psz)
    patches = patches.transpose(0, 2, 4, 1, 3, 5).reshape(B, NP, K)
    patches = jnp.pad(patches, ((0, 0), (1, 0), (0, Kpad - K))).astype(jnp.bfloat16)

    # Fold the class embedding into row 0 of the positional table so the embed
    # kernel is (matmul + add + LN) with no concat.  Only valid because the CLS
    # patch row is exactly zero and the patch projection has no bias.
    cls_pos = params['pos_emb'].at[0].add(params['class_emb'])

    x = embed_op(patches, params['patch_w'], cls_pos,
                 params['pre_ln_g'], params['pre_ln_b'])

    x = encoder_stack(x, params['layers'], cfg['heads'])

    # TODO(synk): HF CLIP applies post_layernorm only to the pooled CLS token;
    # features here correspond to last_hidden_state (no post-LN), as before.
    if extract_type == 'patch':
        return x[:, 1:]
    elif extract_type == 'cls':
        return x[:, 0]
    elif extract_type == 'cls_patch':
        return x
    elif extract_type == 'gap':
        return jnp.mean(x, axis=1)
    # TODO(synk): 'map' (MultiheadAttentionPoolingHead) only exists when
    # config.proj_type == 'map'; not instantiated here.
    raise ValueError(f'Unknown extract_type: {extract_type}')


# --------------------------------- main ---------------------------------------

if __name__ == '__main__':
    # hidden=128 keeps output stores lane-dense (review item 11) while small.
    cfg = dict(image_size=16, patch_size=8, channels=3,
               hidden=128, heads=4, layers=2, mlp=256)

    key = jax.random.PRNGKey(0)
    k_img, k_par = jax.random.split(key)
    images = jax.random.normal(
        k_img, (2, cfg['channels'], cfg['image_size'], cfg['image_size']),
        jnp.float32)
    params = init_params(k_par, cfg)

    out = vision_encoder_forward(params, images, cfg, extract_type='patch')
    out = jax.block_until_ready(out)

    expected_tokens = (cfg['image_size'] // cfg['patch_size']) ** 2
    assert out.shape == (2, expected_tokens, cfg['hidden']), out.shape
    assert bool(jnp.all(jnp.isfinite(out)))
    print("KERNEL_OK")
</pallas_src>

<mosaic_0001>
module attributes {stable_mosaic.version = 11 : i64} {
  func.func @_embed_kernel(%arg0: i32, %arg1: memref<1x5x256xbf16, #tpu.memory_space<vmem>>, %arg2: memref<256x128xbf16, #tpu.memory_space<vmem>>, %arg3: memref<5x128xf32, #tpu.memory_space<vmem>>, %arg4: memref<1x128xf32, #tpu.memory_space<vmem>>, %arg5: memref<1x128xf32, #tpu.memory_space<vmem>>, %arg6: memref<1x5x128xf32, #tpu.memory_space<vmem>>) attributes {dimension_semantics = [#tpu.dimension_semantics<parallel>], iteration_bounds = array<i64: 2>, scalar_prefetch = 0 : i64, scratch_operands = 0 : i64, tpu.core_type = #tpu.core_type<tc>, window_params = [{transform_indices = @transform_0, window_bounds = array<i64: 1, 5, 256>}, {pipeline_mode = #tpu.pipeline_mode<synchronous>, transform_indices = @transform_1, window_bounds = array<i64: 256, 128>}, {pipeline_mode = #tpu.pipeline_mode<synchronous>, transform_indices = @transform_2, window_bounds = array<i64: 5, 128>}, {pipeline_mode = #tpu.pipeline_mode<synchronous>, transform_indices = @transform_3, window_bounds = array<i64: 1, 128>}, {pipeline_mode = #tpu.pipeline_mode<synchronous>, transform_indices = @transform_4, window_bounds = array<i64: 1, 128>}, {transform_indices = @transform_5, window_bounds = array<i64: 1, 5, 128>}]} {
    %c0 = arith.constant 0 : index
    %c0_0 = arith.constant 0 : index
    %c0_1 = arith.constant 0 : index
    %0 = vector.load %arg1[%c0, %c0_0, %c0_1] : memref<1x5x256xbf16, #tpu.memory_space<vmem>>, vector<1x5x256xbf16>
    %1 = vector.shape_cast %0 : vector<1x5x256xbf16> to vector<5x256xbf16>
    %c0_2 = arith.constant 0 : index
    %c0_3 = arith.constant 0 : index
    %2 = vector.load %arg2[%c0_2, %c0_3] : memref<256x128xbf16, #tpu.memory_space<vmem>>, vector<256x128xbf16>
    %cst = arith.constant dense<0.000000e+00> : vector<5x128xf32>
    %3 = tpu.matmul %1, %2, %cst {dimension_numbers = #tpu.dot_dimension_numbers<[1], [0], [0], [1], [0, 0, 1, 1], [], []>} : vector<5x256xbf16>, vector<256x128xbf16>, vector<5x128xf32> -> vector<5x128xf32>
    %c0_4 = arith.constant 0 : index
    %c0_5 = arith.constant 0 : index
    %4 = vector.load %arg3[%c0_4, %c0_5] : memref<5x128xf32, #tpu.memory_space<vmem>>, vector<5x128xf32>
    %5 = arith.addf %3, %4 : vector<5x128xf32>
    %c0_6 = arith.constant 0 : index
    %c0_7 = arith.constant 0 : index
    %6 = vector.load %arg4[%c0_6, %c0_7] : memref<1x128xf32, #tpu.memory_space<vmem>>, vector<1x128xf32>
    %c0_8 = arith.constant 0 : index
    %c0_9 = arith.constant 0 : index
    %7 = vector.load %arg5[%c0_8, %c0_9] : memref<1x128xf32, #tpu.memory_space<vmem>>, vector<1x128xf32>
    %cst_10 = arith.constant dense<0.000000e+00> : vector<5xf32>
    %8 = vector.multi_reduction <add>, %5, %cst_10 [1] : vector<5x128xf32> to vector<5xf32>
    %9 = vector.shape_cast %8 : vector<5xf32> to vector<5x1xf32>
    %cst_11 = arith.constant 1.280000e+02 : f32
    %10 = vector.broadcast %cst_11 : f32 to vector<5x1xf32>
    %11 = arith.divf %9, %10 : vector<5x1xf32>
    %12 = vector.broadcast %11 : vector<5x1xf32> to vector<5x128xf32>
    %13 = arith.subf %5, %12 : vector<5x128xf32>
    %14 = arith.mulf %13, %13 : vector<5x128xf32>
    %cst_12 = arith.constant dense<0.000000e+00> : vector<5xf32>
    %15 = vector.multi_reduction <add>, %14, %cst_12 [1] : vector<5x128xf32> to vector<5xf32>
    %16 = vector.shape_cast %15 : vector<5xf32> to vector<5x1xf32>
    %cst_13 = arith.constant 1.280000e+02 : f32
    %17 = vector.broadcast %cst_13 : f32 to vector<5x1xf32>
    %18 = arith.divf %16, %17 : vector<5x1xf32>
    %19 = vector.broadcast %11 : vector<5x1xf32> to vector<5x128xf32>
    %20 = arith.subf %5, %19 : vector<5x128xf32>
    %cst_14 = arith.constant 9.99999974E-6 : f32
    %21 = vector.broadcast %cst_14 : f32 to vector<5x1xf32>
    %22 = arith.addf %18, %21 : vector<5x1xf32>
    %23 = math.rsqrt %22 : vector<5x1xf32>
    %24 = vector.broadcast %23 : vector<5x1xf32> to vector<5x128xf32>
    %25 = arith.mulf %20, %24 : vector<5x128xf32>
    %26 = vector.broadcast %6 : vector<1x128xf32> to vector<5x128xf32>
    %27 = arith.mulf %25, %26 : vector<5x128xf32>
    %28 = vector.broadcast %7 : vector<1x128xf32> to vector<5x128xf32>
    %29 = arith.addf %27, %28 : vector<5x128xf32>
    %c0_15 = arith.constant 0 : index
    %c0_16 = arith.constant 0 : index
    %c0_17 = arith.constant 0 : index
    %30 = vector.load %arg6[%c0_15, %c0_16, %c0_17] : memref<1x5x128xf32, #tpu.memory_space<vmem>>, vector<1x5x128xf32>
    %31 = vector.shape_cast %30 : vector<1x5x128xf32> to vector<5x128xf32>
    %32 = vector.shape_cast %29 : vector<5x128xf32> to vector<1x5x128xf32>
    tpu.vector_store %arg6[%c0_15, %c0_16, %c0_17], %32 {strides = array<i32>} : memref<1x5x128xf32, #tpu.memory_space<vmem>>, vector<1x5x128xf32>,
    return
  }
  func.func @transform_0(%arg0: i32) -> (i32, i32, i32) {
    %c0_i32 = arith.constant 0 : i32
    %c0_i32_0 = arith.constant 0 : i32
    %c0_i32_1 = arith.constant 0 : i32
    return %arg0, %c0_i32, %c0_i32_0 : i32, i32, i32
  }
  func.func @transform_1(%arg0: i32) -> (i32, i32) {
    %c0_i32 = arith.constant 0 : i32
    %c0_i32_0 = arith.constant 0 : i32
    %c0_i32_1 = arith.constant 0 : i32
    return %c0_i32, %c0_i32_0 : i32, i32
  }
  func.func @transform_2(%arg0: i32) -> (i32, i32) {
    %c0_i32 = arith.constant 0 : i32
    %c0_i32_0 = arith.constant 0 : i32
    %c0_i32_1 = arith.constant 0 : i32
    return %c0_i32, %c0_i32_0 : i32, i32
  }
  func.func @transform_3(%arg0: i32) -> (i32, i32) {
    %c0_i32 = arith.constant 0 : i32
    %c0_i32_0 = arith.constant 0 : i32
    %c0_i32_1 = arith.constant 0 : i32
    return %c0_i32, %c0_i32_0 : i32, i32
  }
  func.func @transform_4(%arg0: i32) -> (i32, i32) {
    %c0_i32 = arith.constant 0 : i32
    %c0_i32_0 = arith.constant 0 : i32
    %c0_i32_1 = arith.constant 0 : i32
    return %c0_i32, %c0_i32_0 : i32, i32
  }
  func.func @transform_5(%arg0: i32) -> (i32, i32, i32) {
    %c0_i32 = arith.constant 0 : i32
    %c0_i32_0 = arith.constant 0 : i32
    %c0_i32_1 = arith.constant 0 : i32
    return %arg0, %c0_i32, %c0_i32_0 : i32, i32, i32
  }
}

module attributes {stable_mosaic.version = 11 : i64} {
  func.func @_embed_kernel(%arg0: i32, %arg1: memref<1x5x256xbf16, #tpu.memory_space<vmem>>, %arg2: memref<256x128xbf16, #tpu.memory_space<vmem>>, %arg3: memref<5x128xf32, #tpu.memory_space<vmem>>, %arg4: memref<1x128xf32, #tpu.memory_space<vmem>>, %arg5: memref<1x128xf32, #tpu.memory_space<vmem>>, %arg6: memref<1x5x128xf32, #tpu.memory_space<vmem>>) attributes {dimension_semantics = [#tpu.dimension_semantics<parallel>], iteration_bounds = array<i64: 2>, scalar_prefetch = 0 : i64, scratch_operands = 0 : i64, tpu.core_type = #tpu.core_type<tc>, window_params = [{transform_indices = @transform_0, window_bounds = array<i64: 1, 5, 256>}, {pipeline_mode = #tpu.pipeline_mode<synchronous>, transform_indices = @transform_1, window_bounds = array<i64: 256, 128>}, {pipeline_mode = #tpu.pipeline_mode<synchronous>, transform_indices = @transform_2, window_bounds = array<i64: 5, 128>}, {pipeline_mode = #tpu.pipeline_mode<synchronous>, transform_indices = @transform_3, window_bounds = array<i64: 1, 128>}, {pipeline_mode = #tpu.pipeline_mode<synchronous>, transform_indices = @transform_4, window_bounds = array<i64: 1, 128>}, {transform_indices = @transform_5, window_bounds = array<i64: 1, 5, 128>}]} {
    %c0 = arith.constant 0 : index
    %c0_0 = arith.constant 0 : index
    %c0_1 = arith.constant 0 : index
    %0 = vector.load %arg1[%c0, %c0_0, %c0_1] : memref<1x5x256xbf16, #tpu.memory_space<vmem>>, vector<1x5x256xbf16>
    %1 = vector.shape_cast %0 : vector<1x5x256xbf16> to vector<5x256xbf16>
    %c0_2 = arith.constant 0 : index
    %c0_3 = arith.constant 0 : index
    %2 = vector.load %arg2[%c0_2, %c0_3] : memref<256x128xbf16, #tpu.memory_space<vmem>>, vector<256x128xbf16>
    %cst = arith.constant dense<0.000000e+00> : vector<5x128xf32>
    %3 = tpu.matmul %1, %2, %cst {dimension_numbers = #tpu.dot_dimension_numbers<[1], [0], [0], [1], [0, 0, 1, 1], [], []>} : vector<5x256xbf16>, vector<256x128xbf16>, vector<5x128xf32> -> vector<5x128xf32>
    %c0_4 = arith.constant 0 : index
    %c0_5 = arith.constant 0 : index
    %4 = vector.load %arg3[%c0_4, %c0_5] : memref<5x128xf32, #tpu.memory_space<vmem>>, vector<5x128xf32>
    %5 = arith.addf %3, %4 : vector<5x128xf32>
    %c0_6 = arith.constant 0 : index
    %c0_7 = arith.constant 0 : index
    %6 = vector.load %arg4[%c0_6, %c0_7] : memref<1x128xf32, #tpu.memory_space<vmem>>, vector<1x128xf32>
    %c0_8 = arith.constant 0 : index
    %c0_9 = arith.constant 0 : index
    %7 = vector.load %arg5[%c0_8, %c0_9] : memref<1x128xf32, #tpu.memory_space<vmem>>, vector<1x128xf32>
    %cst_10 = arith.constant dense<0.000000e+00> : vector<5xf32>
    %8 = vector.multi_reduction <add>, %5, %cst_10 [1] : vector<5x128xf32> to vector<5xf32>
    %9 = vector.shape_cast %8 : vector<5xf32> to vector<5x1xf32>
    %cst_11 = arith.constant 1.280000e+02 : f32
    %10 = vector.broadcast %cst_11 : f32 to vector<5x1xf32>
    %11 = arith.divf %9, %10 : vector<5x1xf32>
    %12 = vector.broadcast %11 : vector<5x1xf32> to vector<5x128xf32>
    %13 = arith.subf %5, %12 : vector<5x128xf32>
    %14 = arith.mulf %13, %13 : vector<5x128xf32>
    %cst_12 = arith.constant dense<0.000000e+00> : vector<5xf32>
    %15 = vector.multi_reduction <add>, %14, %cst_12 [1] : vector<5x128xf32> to vector<5xf32>
    %16 = vector.shape_cast %15 : vector<5xf32> to vector<5x1xf32>
    %cst_13 = arith.constant 1.280000e+02 : f32
    %17 = vector.broadcast %cst_13 : f32 to vector<5x1xf32>
    %18 = arith.divf %16, %17 : vector<5x1xf32>
    %19 = vector.broadcast %11 : vector<5x1xf32> to vector<5x128xf32>
    %20 = arith.subf %5, %19 : vector<5x128xf32>
    %cst_14 = arith.constant 9.99999974E-6 : f32
    %21 = vector.broadcast %cst_14 : f32 to vector<5x1xf32>
    %22 = arith.addf %18, %21 : vector<5x1xf32>
    %23 = math.rsqrt %22 : vector<5x1xf32>
    %24 = vector.broadcast %23 : vector<5x1xf32> to vector<5x128xf32>
    %25 = arith.mulf %20, %24 : vector<5x128xf32>
    %26 = vector.broadcast %6 : vector<1x128xf32> to vector<5x128xf32>
    %27 = arith.mulf %25, %26 : vector<5x128xf32>
    %28 = vector.broadcast %7 : vector<1x128xf32> to vector<5x128xf32>
    %29 = arith.addf %27, %28 : vector<5x128xf32>
    %c0_15 = arith.constant 0 : index
    %c0_16 = arith.constant 0 : index
    %c0_17 = arith.constant 0 : index
    %30 = vector.load %arg6[%c0_15, %c0_16, %c0_17] : memref<1x5x128xf32, #tpu.memory_space<vmem>>, vector<1x5x128xf32>
    %31 = vector.shape_cast %30 : vector<1x5x128xf32> to vector<5x128xf32>
    %32 = vector.shape_cast %29 : vector<5x128xf32> to vector<1x5x128xf32>
    tpu.vector_store %arg6[%c0_15, %c0_16, %c0_17], %32 {strides = array<i32>} : memref<1x5x128xf32, #tpu.memory_space<vmem>>, vector<1x5x128xf32>,
    return
  }
  func.func @transform_0(%arg0: i32) -> (i32, i32, i32) {
    %c0_i32 = arith.constant 0 : i32
    %c0_i32_0 = arith.constant 0 : i32
    %c0_i32_1 = arith.constant 0 : i32
    return %arg0, %c0_i32, %c0_i32_0 : i32, i32, i32
  }
  func.func @transform_1(%arg0: i32) -> (i32, i32) {
    %c0_i32 = arith.constant 0 : i32
    %c0_i32_0 = arith.constant 0 : i32
    %c0_i32_1 = arith.constant 0 : i32
    return %c0_i32, %c0_i32_0 : i32, i32
  }
  func.func @transform_2(%arg0: i32) -> (i32, i32) {
    %c0_i32 = arith.constant 0 : i32
    %c0_i32_0 = arith.constant 0 : i32
    %c0_i32_1 = arith.constant 0 : i32
    return %c0_i32, %c0_i32_0 : i32, i32
  }
  func.func @transform_3(%arg0: i32) -> (i32, i32) {
    %c0_i32 = arith.constant 0 : i32
    %c0_i32_0 = arith.constant 0 : i32
    %c0_i32_1 = arith.constant 0 : i32
    return %c0_i32, %c0_i32_0 : i32, i32
  }
  func.func @transform_4(%arg0: i32) -> (i32, i32) {
    %c0_i32 = arith.constant 0 : i32
    %c0_i32_0 = arith.constant 0 : i32
    %c0_i32_1 = arith.constant 0 : i32
    return %c0_i32, %c0_i32_0 : i32, i32
  }
  func.func @transform_5(%arg0: i32) -> (i32, i32, i32) {
    %c0_i32 = arith.constant 0 : i32
    %c0_i32_0 = arith.constant 0 : i32
    %c0_i32_1 = arith.constant 0 : i32
    return %arg0, %c0_i32, %c0_i32_0 : i32, i32, i32
  }
}

</mosaic_0001>

<llo_original>
// kernel: tpu_custom_call.1
$region0: #{tpu_custom_call.1}
  #allocation0 [shape = 'u32[]', space=smem, size = 0x4, offset = 0x4, fixed_abs, tag = 'smem constant byte address 0x4 - core index']
  #allocation1 [shape = 'u32[144,128]{1,0:T(1,128)}', space=vmem, size = 0x12000, scoped, tag = 'internal scratch']
  %s0 = inlined_call_operand.vmem [shape: bf16[2,5,256], index: 0, kind: input, shape index: {}]
  %s1 = inlined_call_operand.hbm [shape: bf16[256,128], index: 1, kind: input, shape index: {}]
  %s2 = inlined_call_operand.vmem [shape: f32[5,128], index: 2, kind: input, shape index: {}]
  %s3 = inlined_call_operand.vmem [shape: f32[1,128], index: 3, kind: input, shape index: {}]
  %s4 = inlined_call_operand.vmem [shape: f32[1,128], index: 4, kind: input, shape index: {}]
  %s5 = inlined_call_operand.vmem [shape: f32[2,5,128], index: 5, kind: output, shape index: {}]
  %s6 = sld [smem:[#allocation0]]
  $region57: #{tpu_custom_call.1} parent=0
    _
  %s8 = ssub.s32 1, %s6
  %s9 = scalar_select 0, %s8, %s6
  $region1: #{tpu_custom_call.1} parent=0
    #allocation2 [shape = 'u8[65536]{0}', space=vmem, size = 0x10000, scoped, tag = 'input window, operand 1, single buffered']
    #allocation3 [shape = 's32[2]{0}', space=sflag, size = 0x8, scoped, tag = 'scoped memory for tpu_custom_call.1']
    %10 = vsyncpa [#allocation3], 0
    loop: start=0, step=1, limit=4
    $region2: #{tpu_custom_call.1} parent=1 // loop_pre_header
      _
    $region3: #{tpu_custom_call.1} parent=1 // loop_header
      %s12 = sphi 0, %s16
      %p13 = scmp.ge.s32.totalorder %s12, 4
      %s22 = sphi 0, %s24
      %s25 = sphi 0, %s22
      %s26 = sphi 0, %s25
      %s42 = sphi 0, %s26
      %s46 = sphi 0, %s46
      %s48 = sphi 0, %s46
      %s49 = sphi 0, %s48
      %s63 = sphi 0, %s49
      %s67 = sphi 0, %s67
      %s69 = sphi 0, %s67
      %s70 = sphi 0, %s69
      %s84 = sphi 0, %s70
      %s88 = sphi 0, %s88
      %s90 = sphi 0, %s88
      %s91 = sphi 0, %s90
      %s105 = sphi 0, %s91
      %s109 = sphi 0, %s109
      %s111 = sphi 0, %s109
      %s112 = sphi 0, %s111
      %s126 = sphi 0, %s112
      %s132 = sphi 0, %s134
      %s135 = sphi 0, %s132
      %s136 = sphi 0, %s135
      %s152 = sphi 0, %s136
    $region4: #{tpu_custom_call.1} parent=1 // loop_header_branch
      %15 = sbr.rel (%p13) target = $region8
    $region5: #{tpu_custom_call.1} parent=1 // loop_body
      %s17 = ssub.s32 %s12, 1
      %s18 = ssub.s32 %s12, 2
      %s19 = sadd.s32 %s12, 1
      %s20 = ssub.s32 %s12, %s19
      %p21 = scmp.eq.s32.totalorder %s20, 0
      %s23 = sadd.s32 %s22, 1
      %s24 = scalar_select %p21, %s22, %s23
      %p27 = pneg %p21
      %p28 = scmp.eq.s32.totalorder %s12, 1
      %p29 = por %p27, %p28
      %p30 = scmp.ne.s32.totalorder %s22, %s25
      %p31 = scmp.eq.s32.totalorder %s12, 0
      %p32 = por %p30, %p31
      %p33 = scmp.ne.s32.totalorder %s22, %s25
      %p34 = scmp.eq.s32.totalorder %s17, 1
      %p35 = por %p33, %p34
      %p36 = scmp.ne.s32.totalorder %s25, %s26
      %p37 = scmp.eq.s32.totalorder %s17, 0
      %p38 = por %p36, %p37
      %p39 = scmp.ne.s32.totalorder %s25, %s26
      %p40 = scmp.eq.s32.totalorder %s18, 1
      %p41 = por %p39, %p40
      %p43 = scmp.ne.s32.totalorder %s26, %s42
      %p44 = scmp.eq.s32.totalorder %s18, 0
      %p45 = por %p43, %p44
      %s47 = sadd.s32 %s46, 1
      %p50 = scmp.eq.s32.totalorder %s12, 1
      %p51 = scmp.ne.s32.totalorder %s46, %s48
      %p52 = scmp.eq.s32.totalorder %s12, 0
      %p53 = por %p51, %p52
      %p54 = scmp.ne.s32.totalorder %s46, %s48
      %p55 = scmp.eq.s32.totalorder %s17, 1
      %p56 = por %p54, %p55
      %p57 = scmp.ne.s32.totalorder %s48, %s49
      %p58 = scmp.eq.s32.totalorder %s17, 0
      %p59 = por %p57, %p58
      %p60 = scmp.ne.s32.totalorder %s48, %s49
      %p61 = scmp.eq.s32.totalorder %s18, 1
      %p62 = por %p60, %p61
      %p64 = scmp.ne.s32.totalorder %s49, %s63
      %p65 = scmp.eq.s32.totalorder %s18, 0
      %p66 = por %p64, %p65
      %s68 = sadd.s32 %s67, 1
      %p71 = scmp.eq.s32.totalorder %s12, 1
      %p72 = scmp.ne.s32.totalorder %s67, %s69
      %p73 = scmp.eq.s32.totalorder %s12, 0
      %p74 = por %p72, %p73
      %p75 = scmp.ne.s32.totalorder %s67, %s69
      %p76 = scmp.eq.s32.totalorder %s17, 1
      %p77 = por %p75, %p76
      %p78 = scmp.ne.s32.totalorder %s69, %s70
      %p79 = scmp.eq.s32.totalorder %s17, 0
      %p80 = por %p78, %p79
      %p81 = scmp.ne.s32.totalorder %s69, %s70
      %p82 = scmp.eq.s32.totalorder %s18, 1
      %p83 = por %p81, %p82
      %p85 = scmp.ne.s32.totalorder %s70, %s84
      %p86 = scmp.eq.s32.totalorder %s18, 0
      %p87 = por %p85, %p86
      %s89 = sadd.s32 %s88, 1
      %p92 = scmp.eq.s32.totalorder %s12, 1
      %p93 = scmp.ne.s32.totalorder %s88, %s90
      %p94 = scmp.eq.s32.totalorder %s12, 0
      %p95 = por %p93, %p94
      %p96 = scmp.ne.s32.totalorder %s88, %s90
      %p97 = scmp.eq.s32.totalorder %s17, 1
      %p98 = por %p96, %p97
      %p99 = scmp.ne.s32.totalorder %s90, %s91
      %p100 = scmp.eq.s32.totalorder %s17, 0
      %p101 = por %p99, %p100
      %p102 = scmp.ne.s32.totalorder %s90, %s91
      %p103 = scmp.eq.s32.totalorder %s18, 1
      %p104 = por %p102, %p103
      %p106 = scmp.ne.s32.totalorder %s91, %s105
      %p107 = scmp.eq.s32.totalorder %s18, 0
      %p108 = por %p106, %p107
      %s110 = sadd.s32 %s109, 1
      %p113 = scmp.eq.s32.totalorder %s12, 1
      %p114 = scmp.ne.s32.totalorder %s109, %s111
      %p115 = scmp.eq.s32.totalorder %s12, 0
      %p116 = por %p114, %p115
      %p117 = scmp.ne.s32.totalorder %s109, %s111
      %p118 = scmp.eq.s32.totalorder %s17, 1
      %p119 = por %p117, %p118
      %p120 = scmp.ne.s32.totalorder %s111, %s112
      %p121 = scmp.eq.s32.totalorder %s17, 0
      %p122 = por %p120, %p121
      %p123 = scmp.ne.s32.totalorder %s111, %s112
      %p124 = scmp.eq.s32.totalorder %s18, 1
      %p125 = por %p123, %p124
      %p127 = scmp.ne.s32.totalorder %s112, %s126
      %p128 = scmp.eq.s32.totalorder %s18, 0
      %p129 = por %p127, %p128
      %s130 = ssub.s32 %s12, %s19
      %p131 = scmp.eq.s32.totalorder %s130, 0
      %s133 = sadd.s32 %s132, 1
      %s134 = scalar_select %p131, %s132, %s133
      %p137 = pneg %p131
      %p138 = scmp.eq.s32.totalorder %s12, 1
      %p139 = por %p137, %p138
      %p140 = scmp.ne.s32.totalorder %s132, %s135
      %p141 = scmp.eq.s32.totalorder %s12, 0
      %p142 = por %p140, %p141
      %p143 = scmp.ne.s32.totalorder %s132, %s135
      %p144 = scmp.eq.s32.totalorder %s17, 1
      %p145 = por %p143, %p144
      %p146 = scmp.ne.s32.totalorder %s135, %s136
      %p147 = scmp.eq.s32.totalorder %s17, 0
      %p148 = por %p146, %p147
      %p149 = scmp.ne.s32.totalorder %s135, %s136
      %p150 = scmp.eq.s32.totalorder %s18, 1
      %p151 = por %p149, %p150
      %p153 = scmp.ne.s32.totalorder %s136, %s152
      %p154 = scmp.eq.s32.totalorder %s18, 0
      %p155 = por %p153, %p154
      %p156 = scmp.le.s32.totalorder 1, %s12
      %p157 = scmp.lt.s32.totalorder %s12, 3
      %p158 = pnand %p156, %p157
      %p159 = pneg %p158
      // Predicated region
      $region9: #{tpu_custom_call.1} parent=5 // pred_check
        _
      $region10: #{tpu_custom_call.1} parent=5 // pred_check_branch
        %161 = sbr.rel (%p158) target = $region12
      $region11: #{tpu_custom_call.1} parent=5 // pred_region
        %s162 = ssub.s32 %s12, 1
        // Predicated region
        $region13: #{tpu_custom_call.1} parent=11 // pred_check
          %p163 = pneg %p59
        $region14: #{tpu_custom_call.1} parent=11 // pred_check_branch
          %165 = sbr.rel (%p163) target = $region16
        $region15: #{tpu_custom_call.1} parent=11 // pred_region
          %s167 = ssub.s32 2048, 2048
          %168 = vsyncadd [#allocation3], %s167
          %s169 = sshll.u32 [#allocation2], 4
          %s170 = int_to_ptr.vmem [resolvable:$true] %s169
          %175 = dma.hbm_to_vmem [thread:$0]  %s1, 2048, %s170, [#allocation3], 64, 64, 4
        $region16: #{tpu_custom_call.1} parent=11 // pred_fallthru
          _
        // Predicated region
        $region17: #{tpu_custom_call.1} parent=11 // pred_check
          %p176 = pneg %p80
        $region18: #{tpu_custom_call.1} parent=11 // pred_check_branch
          %178 = sbr.rel (%p176) target = $region20
        $region19: #{tpu_custom_call.1} parent=11 // pred_region
          _
        $region20: #{tpu_custom_call.1} parent=11 // pred_fallthru
          _
        // Predicated region
        $region21: #{tpu_custom_call.1} parent=11 // pred_check
          %p179 = pneg %p101
        $region22: #{tpu_custom_call.1} parent=11 // pred_check_branch
          %181 = sbr.rel (%p179) target = $region24
        $region23: #{tpu_custom_call.1} parent=11 // pred_region
          _
        $region24: #{tpu_custom_call.1} parent=11 // pred_fallthru
          _
        // Predicated region
        $region25: #{tpu_custom_call.1} parent=11 // pred_check
          %p182 = pneg %p122
        $region26: #{tpu_custom_call.1} parent=11 // pred_check_branch
          %184 = sbr.rel (%p182) target = $region28
        $region27: #{tpu_custom_call.1} parent=11 // pred_region
          _
        $region28: #{tpu_custom_call.1} parent=11 // pred_fallthru
          _
      $region12: #{tpu_custom_call.1} parent=5 // pred_fallthru
        _
      %p185 = scmp.lt.s32.totalorder %s12, 2
      // Predicated region
      $region29: #{tpu_custom_call.1} parent=5 // pred_check
        %p186 = pneg %p185
      $region30: #{tpu_custom_call.1} parent=5 // pred_check_branch
        %188 = sbr.rel (%p186) target = $region32
      $region31: #{tpu_custom_call.1} parent=5 // pred_region
        // Predicated region
        $region33: #{tpu_custom_call.1} parent=31 // pred_check
          %p189 = pneg %p32
        $region34: #{tpu_custom_call.1} parent=31 // pred_check_branch
          %191 = sbr.rel (%p189) target = $region36
        $region35: #{tpu_custom_call.1} parent=31 // pred_region
          %p192 = scmp.lt.s32.totalorder %s12, 1
          %s193 = scalar_select %p192, %s12, 1
          %s194 = smul.addr %s193, 2
          %s195 = smul.addr %s194, 4
          %s196 = scalar_lea.vmem %s0, %s195
        $region36: #{tpu_custom_call.1} parent=31 // pred_fallthru
          _
      $region32: #{tpu_custom_call.1} parent=5 // pred_fallthru
        _
      %p197 = scmp.le.s32.totalorder 1, %s12
      %p198 = scmp.lt.s32.totalorder %s12, 3
      %p199 = pnand %p197, %p198
      %p200 = pneg %p199
      // Predicated region
      $region37: #{tpu_custom_call.1} parent=5 // pred_check
        _
      $region38: #{tpu_custom_call.1} parent=5 // pred_check_branch
        %202 = sbr.rel (%p199) target = $region40
      $region39: #{tpu_custom_call.1} parent=5 // pred_region
        %s203 = ssub.s32 %s12, 1
        // Predicated region
        $region41: #{tpu_custom_call.1} parent=39 // pred_check
          %p204 = pneg %p59
        $region42: #{tpu_custom_call.1} parent=39 // pred_check_branch
          %206 = sbr.rel (%p204) target = $region44
        $region43: #{tpu_custom_call.1} parent=39 // pred_region
          %207 = dma.done [#allocation3], 2048
        $region44: #{tpu_custom_call.1} parent=39 // pred_fallthru
          _
        %p208 = scmp.lt.s32.totalorder %s17, 1
        %s209 = scalar_select %p208, %s17, 1
        %s210 = smul.addr %s209, 2
        %s211 = smul.addr %s210, 4
        %s212 = scalar_lea.vmem %s0, %s211
        %p213 = pneg %p38
        %p214 = pneg %p35
        %p215 = pneg %p59
        %p216 = pneg %p56
        %p217 = pneg %p80
        %p218 = pneg %p77
        %p219 = pneg %p101
        %p220 = pneg %p98
        %p221 = pneg %p122
        %p222 = pneg %p119
        %p223 = pneg %p148
        %p224 = pneg %p145
        %p225 = scmp.lt.s32.totalorder %s17, 1
        %s226 = scalar_select %p225, %s17, 1
        %s227 = smul.addr %s226, 8
        %s228 = scalar_lea.vmem %s5, %s227
        %p229 = scmp.lt.s32.totalorder %s17, 1
        %s230 = scalar_select %p229, %s17, 1
        %s231 = smul.addr %s230, 2
        %s232 = smul.addr %s231, 4
        %s233 = scalar_lea.vmem %s0, %s232
        %p234 = scmp.lt.s32.totalorder %s17, 1
        %s235 = scalar_select %p234, %s17, 1
        %s236 = smul.addr %s235, 8
        %s237 = scalar_lea.vmem %s5, %s236
        %v239 = vld [vmem:[%s233] sm:$0x77]
        %v240 = vld [vmem:[#allocation2] sm:$0xf]
        %v241 = vld [vmem:[#allocation2 + $0x4] sm:$0xf]
        %v242 = vld [vmem:[#allocation2 + $0x8] sm:$0xf]
        %v243 = vld [vmem:[#allocation2 + $0xc] sm:$0xf]
        %v244 = vld [vmem:[#allocation2 + $0x10] sm:$0xf]
        %v245 = vld [vmem:[#allocation2 + $0x14] sm:$0xf]
        %v246 = vld [vmem:[#allocation2 + $0x18] sm:$0xf]
        %v247 = vld [vmem:[#allocation2 + $0x1c] sm:$0xf]
        %v248 = vld [vmem:[#allocation2 + $0x20] sm:$0xf]
        %v249 = vld [vmem:[#allocation2 + $0x24] sm:$0xf]
        %v250 = vld [vmem:[#allocation2 + $0x28] sm:$0xf]
        %v251 = vld [vmem:[#allocation2 + $0x2c] sm:$0xf]
        %v252 = vld [vmem:[#allocation2 + $0x30] sm:$0xf]
        %v253 = vld [vmem:[#allocation2 + $0x34] sm:$0xf]
        %v254 = vld [vmem:[#allocation2 + $0x38] sm:$0xf]
        %v255 = vld [vmem:[#allocation2 + $0x3c] sm:$0xf]
        %v256 = vld [vmem:[#allocation2 + $0x40] sm:$0xf]
        %v257 = vld [vmem:[#allocation2 + $0x44] sm:$0xf]
        %v258 = vld [vmem:[#allocation2 + $0x48] sm:$0xf]
        %v259 = vld [vmem:[#allocation2 + $0x4c] sm:$0xf]
        %v260 = vld [vmem:[#allocation2 + $0x50] sm:$0xf]
        %v261 = vld [vmem:[#allocation2 + $0x54] sm:$0xf]
        %v262 = vld [vmem:[#allocation2 + $0x58] sm:$0xf]
        %v263 = vld [vmem:[#allocation2 + $0x5c] sm:$0xf]
        %v264 = vld [vmem:[#allocation2 + $0x60] sm:$0xf]
        %v265 = vld [vmem:[#allocation2 + $0x64] sm:$0xf]
        %v266 = vld [vmem:[#allocation2 + $0x68] sm:$0xf]
        %v267 = vld [vmem:[#allocation2 + $0x6c] sm:$0xf]
        %v268 = vld [vmem:[#allocation2 + $0x70] sm:$0xf]
        %v269 = vld [vmem:[#allocation2 + $0x74] sm:$0xf]
        %v270 = vld [vmem:[#allocation2 + $0x78] sm:$0xf]
        %v271 = vld [vmem:[#allocation2 + $0x7c] sm:$0xf]
        %v272 = vld [vmem:[%s2] sm:$0x1f]
        %v274 = vunpack.c.l.b16 %v239
        %v275 = vunpack.c.h.b16 %v239
        %v276 = vpack.c.b16 %v274, %v274
        %v277 = vpack.c.b16 %v275, %v275
        %v312 = vunpack.c.l.b16 %v240
        %v313 = vunpack.c.l.b16 %v241
        %v314 = vunpack.c.l.b16 %v242
        %v315 = vunpack.c.l.b16 %v243
        %v316 = vunpack.c.l.b16 %v244
        %v317 = vunpack.c.l.b16 %v245
        %v318 = vunpack.c.l.b16 %v246
        %v319 = vunpack.c.l.b16 %v247
        %v320 = vunpack.c.l.b16 %v248
        %v321 = vunpack.c.l.b16 %v249
        %v322 = vunpack.c.l.b16 %v250
        %v323 = vunpack.c.l.b16 %v251
        %v324 = vunpack.c.l.b16 %v252
        %v325 = vunpack.c.l.b16 %v253
        %v326 = vunpack.c.l.b16 %v254
        %v327 = vunpack.c.l.b16 %v255
        %v328 = vunpack.c.l.b16 %v256
        %v329 = vunpack.c.l.b16 %v257
        %v330 = vunpack.c.l.b16 %v258
        %v331 = vunpack.c.l.b16 %v259
        %v332 = vunpack.c.l.b16 %v260
        %v333 = vunpack.c.l.b16 %v261
        %v334 = vunpack.c.l.b16 %v262
        %v335 = vunpack.c.l.b16 %v263
        %v336 = vunpack.c.l.b16 %v264
        %v337 = vunpack.c.l.b16 %v265
        %v338 = vunpack.c.l.b16 %v266
        %v339 = vunpack.c.l.b16 %v267
        %v340 = vunpack.c.l.b16 %v268
        %v341 = vunpack.c.l.b16 %v269
        %v342 = vunpack.c.l.b16 %v270
        %v343 = vunpack.c.l.b16 %v271
        %v344 = vpack.c.b16 %v313, %v312
        %v345 = vpack.c.b16 %v315, %v314
        %v346 = vpack.c.b16 %v317, %v316
        %v347 = vpack.c.b16 %v319, %v318
        %v348 = vpack.c.b16 %v321, %v320
        %v349 = vpack.c.b16 %v323, %v322
        %v350 = vpack.c.b16 %v325, %v324
        %v351 = vpack.c.b16 %v327, %v326
        %v352 = vpack.c.b16 %v329, %v328
        %v353 = vpack.c.b16 %v331, %v330
        %v354 = vpack.c.b16 %v333, %v332
        %v355 = vpack.c.b16 %v335, %v334
        %v356 = vpack.c.b16 %v337, %v336
        %v357 = vpack.c.b16 %v339, %v338
        %v358 = vpack.c.b16 %v341, %v340
        %v359 = vpack.c.b16 %v343, %v342
        %376 = vmatprep.subr.bf16.mxu0 0
        %377 = vmatpush1.bf16.msra.mxu0 %v344
        %378 = vmatprep.subr.bf16.mxu0 0
        %379 = vmatpush1.bf16.msra.mxu0 %v345
        %380 = vmatprep.subr.bf16.mxu0 0
        %381 = vmatpush1.bf16.msra.mxu0 %v346
        %382 = vmatprep.subr.bf16.mxu0 0
        %383 = vmatpush1.bf16.msra.mxu0 %v347
        %384 = vmatprep.subr.bf16.mxu0 0
        %385 = vmatpush1.bf16.msra.mxu0 %v348
        %386 = vmatprep.subr.bf16.mxu0 0
        %387 = vmatpush1.bf16.msra.mxu0 %v349
        %388 = vmatprep.subr.bf16.mxu0 0
        %389 = vmatpush1.bf16.msra.mxu0 %v350
        %390 = vmatprep.subr.bf16.mxu0 0
        %391 = vmatpush1.bf16.msra.mxu0 %v351
        %392 = vmatprep.subr.bf16.mxu0 0
        %393 = vmatpush1.bf16.msra.mxu0 %v352
        %394 = vmatprep.subr.bf16.mxu0 0
        %395 = vmatpush1.bf16.msra.mxu0 %v353
        %396 = vmatprep.subr.bf16.mxu0 0
        %397 = vmatpush1.bf16.msra.mxu0 %v354
        %398 = vmatprep.subr.bf16.mxu0 0
        %399 = vmatpush1.bf16.msra.mxu0 %v355
        %400 = vmatprep.subr.bf16.mxu0 0
        %401 = vmatpush1.bf16.msra.mxu0 %v356
        %402 = vmatprep.subr.bf16.mxu0 0
        %403 = vmatpush1.bf16.msra.mxu0 %v357
        %404 = vmatprep.subr.bf16.mxu0 0
        %405 = vmatpush1.bf16.msra.mxu0 %v358
        %406 = vmatprep.subr.bf16.mxu0 0
        %407 = vmatpush1.bf16.msra.mxu0 %v359
        %408 = vmatprep.mubr.bf16.mxu0 %v277
        %409 = vmatmul.mubr.bf16.gmra.mrb[0].mxu0 %v276
        %v410 = vpop.f32.mrb[0].mxu0
        %v411 = vadd.f32 %v272, %v410
        %v412 = vpop.f32.mrb[0].mxu0
        %v413 = vpop.f32.mrb[0].mxu0
        %v414 = vpop.f32.mrb[0].mxu0
        %415 = vdwg.mxu0
        %v416 = vld [vmem:[%s3] sm:$0x1]
        %v417 = vld [vmem:[%s4] sm:$0x1]
        %vm418 = vcmask 1044480
        %v419 = vsel %vm418, %v411, 0.0
        %420 = vadd.xlane.f32.xlu0 %v419
        %v421 = vpop.xlane.xlu0 %420
        %v422 = vrcp.pop 128.0
        %v423 = vmul.f32 %v421, %v422
        %v424 = vsub.f32 %v411, %v423
        %v425 = vmul.f32 %v424, %v424
        %v426 = vsel %vm418, %v425, 0.0
        %427 = vadd.xlane.f32.xlu0 %v426
        %v428 = vpop.xlane.xlu0 %427
        %v429 = vmul.f32 %v428, %v422
        %v430 = vadd.f32 %v429, 1e-05
        %v431 = vrsqrt.pop %v430
        %v432 = vmul.f32 %v424, %v431
        %v434 = vlaneseq
        %v435 = vshrl.u32 %v434, 7
        %v436 = vsub.s32 0, %v435
        %v437 = vrot.slane %v416, %v436
        %v439 = vmul.f32 %v432, %v437
        %v441 = vlaneseq
        %v442 = vshrl.u32 %v441, 7
        %v443 = vsub.s32 0, %v442
        %v444 = vrot.slane %v417, %v443
        %v446 = vadd.f32 %v439, %v444
        %447 = vst [vmem:[%s237] sm:$0x1f] %v446
        %p448 = scmp.lt.s32.totalorder %s17, 1
        %s449 = scalar_select %p448, %s17, 1
        %s450 = smul.addr %s449, 8
        %s451 = scalar_lea.vmem %s5, %s450
        // Predicated region
        $region45: #{tpu_custom_call.1} parent=39 // pred_check
          %p452 = pneg %p145
        $region46: #{tpu_custom_call.1} parent=39 // pred_check_branch
          %454 = sbr.rel (%p452) target = $region48
        $region47: #{tpu_custom_call.1} parent=39 // pred_region
          _
        $region48: #{tpu_custom_call.1} parent=39 // pred_fallthru
          _
      $region40: #{tpu_custom_call.1} parent=5 // pred_fallthru
        _
      %p455 = scmp.le.s32.totalorder 2, %s12
      // Predicated region
      $region49: #{tpu_custom_call.1} parent=5 // pred_check
        %p456 = pneg %p455
      $region50: #{tpu_custom_call.1} parent=5 // pred_check_branch
        %458 = sbr.rel (%p456) target = $region52
      $region51: #{tpu_custom_call.1} parent=5 // pred_region
        %s459 = ssub.s32 %s12, 2
        // Predicated region
        $region53: #{tpu_custom_call.1} parent=51 // pred_check
          %p460 = pneg %p151
        $region54: #{tpu_custom_call.1} parent=51 // pred_check_branch
          %462 = sbr.rel (%p460) target = $region56
        $region55: #{tpu_custom_call.1} parent=51 // pred_region
          %p463 = scmp.lt.s32.totalorder %s18, 1
          %s464 = scalar_select %p463, %s18, 1
          %s465 = smul.addr %s464, 8
          %s466 = scalar_lea.vmem %s5, %s465
        $region56: #{tpu_custom_call.1} parent=51 // pred_fallthru
          _
      $region52: #{tpu_custom_call.1} parent=5 // pred_fallthru
        _
    $region6: #{tpu_custom_call.1} parent=1 // loop_footer
      %s16 = sadd.s32 1, %s12
    $region7: #{tpu_custom_call.1} parent=1 // loop_footer_branch
      %11 = sbr.rel target = $region3
    $region8: #{tpu_custom_call.1} parent=1 // loop_exit
      _
    %467 = vsyncpa [#allocation3], 1
    %s468 = scalar_lea.sflag [#allocation3], 1
    %469 = vsyncpa %s468, 1

// kernel: tpu_custom_call.1
$region0: #{tpu_custom_call.1}
  #allocation0 [shape = 'u32[]', space=smem, size = 0x4, offset = 0x4, fixed_abs, tag = 'smem constant byte address 0x4 - core index']
  #allocation1 [shape = 'u32[144,128]{1,0:T(1,128)}', space=vmem, size = 0x12000, scoped, tag = 'internal scratch']
  %s0 = inlined_call_operand.vmem [shape: bf16[2,5,256], index: 0, kind: input, shape index: {}]
  %s1 = inlined_call_operand.hbm [shape: bf16[256,128], index: 1, kind: input, shape index: {}]
  %s2 = inlined_call_operand.vmem [shape: f32[5,128], index: 2, kind: input, shape index: {}]
  %s3 = inlined_call_operand.vmem [shape: f32[1,128], index: 3, kind: input, shape index: {}]
  %s4 = inlined_call_operand.vmem [shape: f32[1,128], index: 4, kind: input, shape index: {}]
  %s5 = inlined_call_operand.vmem [shape: f32[2,5,128], index: 5, kind: output, shape index: {}]
  %s6 = sld [smem:[#allocation0]]
  $region57: #{tpu_custom_call.1} parent=0
    _
  %s8 = ssub.s32 1, %s6
  %s9 = scalar_select 0, %s8, %s6
  $region1: #{tpu_custom_call.1} parent=0
    #allocation2 [shape = 'u8[65536]{0}', space=vmem, size = 0x10000, scoped, tag = 'input window, operand 1, single buffered']
    #allocation3 [shape = 's32[2]{0}', space=sflag, size = 0x8, scoped, tag = 'scoped memory for tpu_custom_call.1']
    %10 = vsyncpa [#allocation3], 0
    loop: start=0, step=1, limit=4
    $region2: #{tpu_custom_call.1} parent=1 // loop_pre_header
      _
    $region3: #{tpu_custom_call.1} parent=1 // loop_header
      %s12 = sphi 0, %s16
      %p13 = scmp.ge.s32.totalorder %s12, 4
      %s22 = sphi 0, %s24
      %s25 = sphi 0, %s22
      %s26 = sphi 0, %s25
      %s42 = sphi 0, %s26
      %s46 = sphi 0, %s46
      %s48 = sphi 0, %s46
      %s49 = sphi 0, %s48
      %s63 = sphi 0, %s49
      %s67 = sphi 0, %s67
      %s69 = sphi 0, %s67
      %s70 = sphi 0, %s69
      %s84 = sphi 0, %s70
      %s88 = sphi 0, %s88
      %s90 = sphi 0, %s88
      %s91 = sphi 0, %s90
      %s105 = sphi 0, %s91
      %s109 = sphi 0, %s109
      %s111 = sphi 0, %s109
      %s112 = sphi 0, %s111
      %s126 = sphi 0, %s112
      %s132 = sphi 0, %s134
      %s135 = sphi 0, %s132
      %s136 = sphi 0, %s135
      %s152 = sphi 0, %s136
    $region4: #{tpu_custom_call.1} parent=1 // loop_header_branch
      %15 = sbr.rel (%p13) target = $region8
    $region5: #{tpu_custom_call.1} parent=1 // loop_body
      %s17 = ssub.s32 %s12, 1
      %s18 = ssub.s32 %s12, 2
      %s19 = sadd.s32 %s12, 1
      %s20 = ssub.s32 %s12, %s19
      %p21 = scmp.eq.s32.totalorder %s20, 0
      %s23 = sadd.s32 %s22, 1
      %s24 = scalar_select %p21, %s22, %s23
      %p27 = pneg %p21
      %p28 = scmp.eq.s32.totalorder %s12, 1
      %p29 = por %p27, %p28
      %p30 = scmp.ne.s32.totalorder %s22, %s25
      %p31 = scmp.eq.s32.totalorder %s12, 0
      %p32 = por %p30, %p31
      %p33 = scmp.ne.s32.totalorder %s22, %s25
      %p34 = scmp.eq.s32.totalorder %s17, 1
      %p35 = por %p33, %p34
      %p36 = scmp.ne.s32.totalorder %s25, %s26
      %p37 = scmp.eq.s32.totalorder %s17, 0
      %p38 = por %p36, %p37
      %p39 = scmp.ne.s32.totalorder %s25, %s26
      %p40 = scmp.eq.s32.totalorder %s18, 1
      %p41 = por %p39, %p40
      %p43 = scmp.ne.s32.totalorder %s26, %s42
      %p44 = scmp.eq.s32.totalorder %s18, 0
      %p45 = por %p43, %p44
      %s47 = sadd.s32 %s46, 1
      %p50 = scmp.eq.s32.totalorder %s12, 1
      %p51 = scmp.ne.s32.totalorder %s46, %s48
      %p52 = scmp.eq.s32.totalorder %s12, 0
      %p53 = por %p51, %p52
      %p54 = scmp.ne.s32.totalorder %s46, %s48
      %p55 = scmp.eq.s32.totalorder %s17, 1
      %p56 = por %p54, %p55
      %p57 = scmp.ne.s32.totalorder %s48, %s49
      %p58 = scmp.eq.s32.totalorder %s17, 0
      %p59 = por %p57, %p58
      %p60 = scmp.ne.s32.totalorder %s48, %s49
      %p61 = scmp.eq.s32.totalorder %s18, 1
      %p62 = por %p60, %p61
      %p64 = scmp.ne.s32.totalorder %s49, %s63
      %p65 = scmp.eq.s32.totalorder %s18, 0
      %p66 = por %p64, %p65
      %s68 = sadd.s32 %s67, 1
      %p71 = scmp.eq.s32.totalorder %s12, 1
      %p72 = scmp.ne.s32.totalorder %s67, %s69
      %p73 = scmp.eq.s32.totalorder %s12, 0
      %p74 = por %p72, %p73
      %p75 = scmp.ne.s32.totalorder %s67, %s69
      %p76 = scmp.eq.s32.totalorder %s17, 1
      %p77 = por %p75, %p76
      %p78 = scmp.ne.s32.totalorder %s69, %s70
      %p79 = scmp.eq.s32.totalorder %s17, 0
      %p80 = por %p78, %p79
      %p81 = scmp.ne.s32.totalorder %s69, %s70
      %p82 = scmp.eq.s32.totalorder %s18, 1
      %p83 = por %p81, %p82
      %p85 = scmp.ne.s32.totalorder %s70, %s84
      %p86 = scmp.eq.s32.totalorder %s18, 0
      %p87 = por %p85, %p86
      %s89 = sadd.s32 %s88, 1
      %p92 = scmp.eq.s32.totalorder %s12, 1
      %p93 = scmp.ne.s32.totalorder %s88, %s90
      %p94 = scmp.eq.s32.totalorder %s12, 0
      %p95 = por %p93, %p94
      %p96 = scmp.ne.s32.totalorder %s88, %s90
      %p97 = scmp.eq.s32.totalorder %s17, 1
      %p98 = por %p96, %p97
      %p99 = scmp.ne.s32.totalorder %s90, %s91
      %p100 = scmp.eq.s32.totalorder %s17, 0
      %p101 = por %p99, %p100
      %p102 = scmp.ne.s32.totalorder %s90, %s91
      %p103 = scmp.eq.s32.totalorder %s18, 1
      %p104 = por %p102, %p103
      %p106 = scmp.ne.s32.totalorder %s91, %s105
      %p107 = scmp.eq.s32.totalorder %s18, 0
      %p108 = por %p106, %p107
      %s110 = sadd.s32 %s109, 1
      %p113 = scmp.eq.s32.totalorder %s12, 1
      %p114 = scmp.ne.s32.totalorder %s109, %s111
      %p115 = scmp.eq.s32.totalorder %s12, 0
      %p116 = por %p114, %p115
      %p117 = scmp.ne.s32.totalorder %s109, %s111
      %p118 = scmp.eq.s32.totalorder %s17, 1
      %p119 = por %p117, %p118
      %p120 = scmp.ne.s32.totalorder %s111, %s112
      %p121 = scmp.eq.s32.totalorder %s17, 0
      %p122 = por %p120, %p121
      %p123 = scmp.ne.s32.totalorder %s111, %s112
      %p124 = scmp.eq.s32.totalorder %s18, 1
      %p125 = por %p123, %p124
      %p127 = scmp.ne.s32.totalorder %s112, %s126
      %p128 = scmp.eq.s32.totalorder %s18, 0
      %p129 = por %p127, %p128
      %s130 = ssub.s32 %s12, %s19
      %p131 = scmp.eq.s32.totalorder %s130, 0
      %s133 = sadd.s32 %s132, 1
      %s134 = scalar_select %p131, %s132, %s133
      %p137 = pneg %p131
      %p138 = scmp.eq.s32.totalorder %s12, 1
      %p139 = por %p137, %p138
      %p140 = scmp.ne.s32.totalorder %s132, %s135
      %p141 = scmp.eq.s32.totalorder %s12, 0
      %p142 = por %p140, %p141
      %p143 = scmp.ne.s32.totalorder %s132, %s135
      %p144 = scmp.eq.s32.totalorder %s17, 1
      %p145 = por %p143, %p144
      %p146 = scmp.ne.s32.totalorder %s135, %s136
      %p147 = scmp.eq.s32.totalorder %s17, 0
      %p148 = por %p146, %p147
      %p149 = scmp.ne.s32.totalorder %s135, %s136
      %p150 = scmp.eq.s32.totalorder %s18, 1
      %p151 = por %p149, %p150
      %p153 = scmp.ne.s32.totalorder %s136, %s152
      %p154 = scmp.eq.s32.totalorder %s18, 0
      %p155 = por %p153, %p154
      %p156 = scmp.le.s32.totalorder 1, %s12
      %p157 = scmp.lt.s32.totalorder %s12, 3
      %p158 = pnand %p156, %p157
      %p159 = pneg %p158
      // Predicated region
      $region9: #{tpu_custom_call.1} parent=5 // pred_check
        _
      $region10: #{tpu_custom_call.1} parent=5 // pred_check_branch
        %161 = sbr.rel (%p158) target = $region12
      $region11: #{tpu_custom_call.1} parent=5 // pred_region
        %s162 = ssub.s32 %s12, 1
        // Predicated region
        $region13: #{tpu_custom_call.1} parent=11 // pred_check
          %p163 = pneg %p59
        $region14: #{tpu_custom_call.1} parent=11 // pred_check_branch
          %165 = sbr.rel (%p163) target = $region16
        $region15: #{tpu_custom_call.1} parent=11 // pred_region
          %s167 = ssub.s32 2048, 2048
          %168 = vsyncadd [#allocation3], %s167
          %s169 = sshll.u32 [#allocation2], 4
          %s170 = int_to_ptr.vmem [resolvable:$true] %s169
          %175 = dma.hbm_to_vmem [thread:$0]  %s1, 2048, %s170, [#allocation3], 64, 64, 4
        $region16: #{tpu_custom_call.1} parent=11 // pred_fallthru
          _
        // Predicated region
        $region17: #{tpu_custom_call.1} parent=11 // pred_check
          %p176 = pneg %p80
        $region18: #{tpu_custom_call.1} parent=11 // pred_check_branch
          %178 = sbr.rel (%p176) target = $region20
        $region19: #{tpu_custom_call.1} parent=11 // pred_region
          _
        $region20: #{tpu_custom_call.1} parent=11 // pred_fallthru
          _
        // Predicated region
        $region21: #{tpu_custom_call.1} parent=11 // pred_check
          %p179 = pneg %p101
        $region22: #{tpu_custom_call.1} parent=11 // pred_check_branch
          %181 = sbr.rel (%p179) target = $region24
        $region23: #{tpu_custom_call.1} parent=11 // pred_region
          _
        $region24: #{tpu_custom_call.1} parent=11 // pred_fallthru
          _
        // Predicated region
        $region25: #{tpu_custom_call.1} parent=11 // pred_check
          %p182 = pneg %p122
        $region26: #{tpu_custom_call.1} parent=11 // pred_check_branch
          %184 = sbr.rel (%p182) target = $region28
        $region27: #{tpu_custom_call.1} parent=11 // pred_region
          _
        $region28: #{tpu_custom_call.1} parent=11 // pred_fallthru
          _
      $region12: #{tpu_custom_call.1} parent=5 // pred_fallthru
        _
      %p185 = scmp.lt.s32.totalorder %s12, 2
      // Predicated region
      $region29: #{tpu_custom_call.1} parent=5 // pred_check
        %p186 = pneg %p185
      $region30: #{tpu_custom_call.1} parent=5 // pred_check_branch
        %188 = sbr.rel (%p186) target = $region32
      $region31: #{tpu_custom_call.1} parent=5 // pred_region
        // Predicated region
        $region33: #{tpu_custom_call.1} parent=31 // pred_check
          %p189 = pneg %p32
        $region34: #{tpu_custom_call.1} parent=31 // pred_check_branch
          %191 = sbr.rel (%p189) target = $region36
        $region35: #{tpu_custom_call.1} parent=31 // pred_region
          %p192 = scmp.lt.s32.totalorder %s12, 1
          %s193 = scalar_select %p192, %s12, 1
          %s194 = smul.addr %s193, 2
          %s195 = smul.addr %s194, 4
          %s196 = scalar_lea.vmem %s0, %s195
        $region36: #{tpu_custom_call.1} parent=31 // pred_fallthru
          _
      $region32: #{tpu_custom_call.1} parent=5 // pred_fallthru
        _
      %p197 = scmp.le.s32.totalorder 1, %s12
      %p198 = scmp.lt.s32.totalorder %s12, 3
      %p199 = pnand %p197, %p198
      %p200 = pneg %p199
      // Predicated region
      $region37: #{tpu_custom_call.1} parent=5 // pred_check
        _
      $region38: #{tpu_custom_call.1} parent=5 // pred_check_branch
        %202 = sbr.rel (%p199) target = $region40
      $region39: #{tpu_custom_call.1} parent=5 // pred_region
        %s203 = ssub.s32 %s12, 1
        // Predicated region
        $region41: #{tpu_custom_call.1} parent=39 // pred_check
          %p204 = pneg %p59
        $region42: #{tpu_custom_call.1} parent=39 // pred_check_branch
          %206 = sbr.rel (%p204) target = $region44
        $region43: #{tpu_custom_call.1} parent=39 // pred_region
          %207 = dma.done [#allocation3], 2048
        $region44: #{tpu_custom_call.1} parent=39 // pred_fallthru
          _
        %p208 = scmp.lt.s32.totalorder %s17, 1
        %s209 = scalar_select %p208, %s17, 1
        %s210 = smul.addr %s209, 2
        %s211 = smul.addr %s210, 4
        %s212 = scalar_lea.vmem %s0, %s211
        %p213 = pneg %p38
        %p214 = pneg %p35
        %p215 = pneg %p59
        %p216 = pneg %p56
        %p217 = pneg %p80
        %p218 = pneg %p77
        %p219 = pneg %p101
        %p220 = pneg %p98
        %p221 = pneg %p122
        %p222 = pneg %p119
        %p223 = pneg %p148
        %p224 = pneg %p145
        %p225 = scmp.lt.s32.totalorder %s17, 1
        %s226 = scalar_select %p225, %s17, 1
        %s227 = smul.addr %s226, 8
        %s228 = scalar_lea.vmem %s5, %s227
        %p229 = scmp.lt.s32.totalorder %s17, 1
        %s230 = scalar_select %p229, %s17, 1
        %s231 = smul.addr %s230, 2
        %s232 = smul.addr %s231, 4
        %s233 = scalar_lea.vmem %s0, %s232
        %p234 = scmp.lt.s32.totalorder %s17, 1
        %s235 = scalar_select %p234, %s17, 1
        %s236 = smul.addr %s235, 8
        %s237 = scalar_lea.vmem %s5, %s236
        %v239 = vld [vmem:[%s233] sm:$0x77]
        %v240 = vld [vmem:[#allocation2] sm:$0xf]
        %v241 = vld [vmem:[#allocation2 + $0x4] sm:$0xf]
        %v242 = vld [vmem:[#allocation2 + $0x8] sm:$0xf]
        %v243 = vld [vmem:[#allocation2 + $0xc] sm:$0xf]
        %v244 = vld [vmem:[#allocation2 + $0x10] sm:$0xf]
        %v245 = vld [vmem:[#allocation2 + $0x14] sm:$0xf]
        %v246 = vld [vmem:[#allocation2 + $0x18] sm:$0xf]
        %v247 = vld [vmem:[#allocation2 + $0x1c] sm:$0xf]
        %v248 = vld [vmem:[#allocation2 + $0x20] sm:$0xf]
        %v249 = vld [vmem:[#allocation2 + $0x24] sm:$0xf]
        %v250 = vld [vmem:[#allocation2 + $0x28] sm:$0xf]
        %v251 = vld [vmem:[#allocation2 + $0x2c] sm:$0xf]
        %v252 = vld [vmem:[#allocation2 + $0x30] sm:$0xf]
        %v253 = vld [vmem:[#allocation2 + $0x34] sm:$0xf]
        %v254 = vld [vmem:[#allocation2 + $0x38] sm:$0xf]
        %v255 = vld [vmem:[#allocation2 + $0x3c] sm:$0xf]
        %v256 = vld [vmem:[#allocation2 + $0x40] sm:$0xf]
        %v257 = vld [vmem:[#allocation2 + $0x44] sm:$0xf]
        %v258 = vld [vmem:[#allocation2 + $0x48] sm:$0xf]
        %v259 = vld [vmem:[#allocation2 + $0x4c] sm:$0xf]
        %v260 = vld [vmem:[#allocation2 + $0x50] sm:$0xf]
        %v261 = vld [vmem:[#allocation2 + $0x54] sm:$0xf]
        %v262 = vld [vmem:[#allocation2 + $0x58] sm:$0xf]
        %v263 = vld [vmem:[#allocation2 + $0x5c] sm:$0xf]
        %v264 = vld [vmem:[#allocation2 + $0x60] sm:$0xf]
        %v265 = vld [vmem:[#allocation2 + $0x64] sm:$0xf]
        %v266 = vld [vmem:[#allocation2 + $0x68] sm:$0xf]
        %v267 = vld [vmem:[#allocation2 + $0x6c] sm:$0xf]
        %v268 = vld [vmem:[#allocation2 + $0x70] sm:$0xf]
        %v269 = vld [vmem:[#allocation2 + $0x74] sm:$0xf]
        %v270 = vld [vmem:[#allocation2 + $0x78] sm:$0xf]
        %v271 = vld [vmem:[#allocation2 + $0x7c] sm:$0xf]
        %v272 = vld [vmem:[%s2] sm:$0x1f]
        %v274 = vunpack.c.l.b16 %v239
        %v275 = vunpack.c.h.b16 %v239
        %v276 = vpack.c.b16 %v274, %v274
        %v277 = vpack.c.b16 %v275, %v275
        %v312 = vunpack.c.l.b16 %v240
        %v313 = vunpack.c.l.b16 %v241
        %v314 = vunpack.c.l.b16 %v242
        %v315 = vunpack.c.l.b16 %v243
        %v316 = vunpack.c.l.b16 %v244
        %v317 = vunpack.c.l.b16 %v245
        %v318 = vunpack.c.l.b16 %v246
        %v319 = vunpack.c.l.b16 %v247
        %v320 = vunpack.c.l.b16 %v248
        %v321 = vunpack.c.l.b16 %v249
        %v322 = vunpack.c.l.b16 %v250
        %v323 = vunpack.c.l.b16 %v251
        %v324 = vunpack.c.l.b16 %v252
        %v325 = vunpack.c.l.b16 %v253
        %v326 = vunpack.c.l.b16 %v254
        %v327 = vunpack.c.l.b16 %v255
        %v328 = vunpack.c.l.b16 %v256
        %v329 = vunpack.c.l.b16 %v257
        %v330 = vunpack.c.l.b16 %v258
        %v331 = vunpack.c.l.b16 %v259
        %v332 = vunpack.c.l.b16 %v260
        %v333 = vunpack.c.l.b16 %v261
        %v334 = vunpack.c.l.b16 %v262
        %v335 = vunpack.c.l.b16 %v263
        %v336 = vunpack.c.l.b16 %v264
        %v337 = vunpack.c.l.b16 %v265
        %v338 = vunpack.c.l.b16 %v266
        %v339 = vunpack.c.l.b16 %v267
        %v340 = vunpack.c.l.b16 %v268
        %v341 = vunpack.c.l.b16 %v269
        %v342 = vunpack.c.l.b16 %v270
        %v343 = vunpack.c.l.b16 %v271
        %v344 = vpack.c.b16 %v313, %v312
        %v345 = vpack.c.b16 %v315, %v314
        %v346 = vpack.c.b16 %v317, %v316
        %v347 = vpack.c.b16 %v319, %v318
        %v348 = vpack.c.b16 %v321, %v320
        %v349 = vpack.c.b16 %v323, %v322
        %v350 = vpack.c.b16 %v325, %v324
        %v351 = vpack.c.b16 %v327, %v326
        %v352 = vpack.c.b16 %v329, %v328
        %v353 = vpack.c.b16 %v331, %v330
        %v354 = vpack.c.b16 %v333, %v332
        %v355 = vpack.c.b16 %v335, %v334
        %v356 = vpack.c.b16 %v337, %v336
        %v357 = vpack.c.b16 %v339, %v338
        %v358 = vpack.c.b16 %v341, %v340
        %v359 = vpack.c.b16 %v343, %v342
        %376 = vmatprep.subr.bf16.mxu0 0
        %377 = vmatpush1.bf16.msra.mxu0 %v344
        %378 = vmatprep.subr.bf16.mxu0 0
        %379 = vmatpush1.bf16.msra.mxu0 %v345
        %380 = vmatprep.subr.bf16.mxu0 0
        %381 = vmatpush1.bf16.msra.mxu0 %v346
        %382 = vmatprep.subr.bf16.mxu0 0
        %383 = vmatpush1.bf16.msra.mxu0 %v347
        %384 = vmatprep.subr.bf16.mxu0 0
        %385 = vmatpush1.bf16.msra.mxu0 %v348
        %386 = vmatprep.subr.bf16.mxu0 0
        %387 = vmatpush1.bf16.msra.mxu0 %v349
        %388 = vmatprep.subr.bf16.mxu0 0
        %389 = vmatpush1.bf16.msra.mxu0 %v350
        %390 = vmatprep.subr.bf16.mxu0 0
        %391 = vmatpush1.bf16.msra.mxu0 %v351
        %392 = vmatprep.subr.bf16.mxu0 0
        %393 = vmatpush1.bf16.msra.mxu0 %v352
        %394 = vmatprep.subr.bf16.mxu0 0
        %395 = vmatpush1.bf16.msra.mxu0 %v353
        %396 = vmatprep.subr.bf16.mxu0 0
        %397 = vmatpush1.bf16.msra.mxu0 %v354
        %398 = vmatprep.subr.bf16.mxu0 0
        %399 = vmatpush1.bf16.msra.mxu0 %v355
        %400 = vmatprep.subr.bf16.mxu0 0
        %401 = vmatpush1.bf16.msra.mxu0 %v356
        %402 = vmatprep.subr.bf16.mxu0 0
        %403 = vmatpush1.bf16.msra.mxu0 %v357
        %404 = vmatprep.subr.bf16.mxu0 0
        %405 = vmatpush1.bf16.msra.mxu0 %v358
        %406 = vmatprep.subr.bf16.mxu0 0
        %407 = vmatpush1.bf16.msra.mxu0 %v359
        %408 = vmatprep.mubr.bf16.mxu0 %v277
        %409 = vmatmul.mubr.bf16.gmra.mrb[0].mxu0 %v276
        %v410 = vpop.f32.mrb[0].mxu0
        %v411 = vadd.f32 %v272, %v410
        %v412 = vpop.f32.mrb[0].mxu0
        %v413 = vpop.f32.mrb[0].mxu0
        %v414 = vpop.f32.mrb[0].mxu0
        %415 = vdwg.mxu0
        %v416 = vld [vmem:[%s3] sm:$0x1]
        %v417 = vld [vmem:[%s4] sm:$0x1]
        %vm418 = vcmask 1044480
        %v419 = vsel %vm418, %v411, 0.0
        %420 = vadd.xlane.f32.xlu0 %v419
        %v421 = vpop.xlane.xlu0 %420
        %v422 = vrcp.pop 128.0
        %v423 = vmul.f32 %v421, %v422
        %v424 = vsub.f32 %v411, %v423
        %v425 = vmul.f32 %v424, %v424
        %v426 = vsel %vm418, %v425, 0.0
        %427 = vadd.xlane.f32.xlu0 %v426
        %v428 = vpop.xlane.xlu0 %427
        %v429 = vmul.f32 %v428, %v422
        %v430 = vadd.f32 %v429, 1e-05
        %v431 = vrsqrt.pop %v430
        %v432 = vmul.f32 %v424, %v431
        %v434 = vlaneseq
        %v435 = vshrl.u32 %v434, 7
        %v436 = vsub.s32 0, %v435
        %v437 = vrot.slane %v416, %v436
        %v439 = vmul.f32 %v432, %v437
        %v441 = vlaneseq
        %v442 = vshrl.u32 %v441, 7
        %v443 = vsub.s32 0, %v442
        %v444 = vrot.slane %v417, %v443
        %v446 = vadd.f32 %v439, %v444
        %447 = vst [vmem:[%s237] sm:$0x1f] %v446
        %p448 = scmp.lt.s32.totalorder %s17, 1
        %s449 = scalar_select %p448, %s17, 1
        %s450 = smul.addr %s449, 8
        %s451 = scalar_lea.vmem %s5, %s450
        // Predicated region
        $region45: #{tpu_custom_call.1} parent=39 // pred_check
          %p452 = pneg %p145
        $region46: #{tpu_custom_call.1} parent=39 // pred_check_branch
          %454 = sbr.rel (%p452) target = $region48
        $region47: #{tpu_custom_call.1} parent=39 // pred_region
          _
        $region48: #{tpu_custom_call.1} parent=39 // pred_fallthru
          _
      $region40: #{tpu_custom_call.1} parent=5 // pred_fallthru
        _
      %p455 = scmp.le.s32.totalorder 2, %s12
      // Predicated region
      $region49: #{tpu_custom_call.1} parent=5 // pred_check
        %p456 = pneg %p455
      $region50: #{tpu_custom_call.1} parent=5 // pred_check_branch
        %458 = sbr.rel (%p456) target = $region52
      $region51: #{tpu_custom_call.1} parent=5 // pred_region
        %s459 = ssub.s32 %s12, 2
        // Predicated region
        $region53: #{tpu_custom_call.1} parent=51 // pred_check
          %p460 = pneg %p151
        $region54: #{tpu_custom_call.1} parent=51 // pred_check_branch
          %462 = sbr.rel (%p460) target = $region56
        $region55: #{tpu_custom_call.1} parent=51 // pred_region
          %p463 = scmp.lt.s32.totalorder %s18, 1
          %s464 = scalar_select %p463, %s18, 1
          %s465 = smul.addr %s464, 8
          %s466 = scalar_lea.vmem %s5, %s465
        $region56: #{tpu_custom_call.1} parent=51 // pred_fallthru
          _
      $region52: #{tpu_custom_call.1} parent=5 // pred_fallthru
        _
    $region6: #{tpu_custom_call.1} parent=1 // loop_footer
      %s16 = sadd.s32 1, %s12
    $region7: #{tpu_custom_call.1} parent=1 // loop_footer_branch
      %11 = sbr.rel target = $region3
    $region8: #{tpu_custom_call.1} parent=1 // loop_exit
      _
    %467 = vsyncpa [#allocation3], 1
    %s468 = scalar_lea.sflag [#allocation3], 1
    %469 = vsyncpa %s468, 1

</llo_original>
